<compile_context>
chip_gen: v7x
topology: tpu7x:2x2x1
jax: 0.10.0
libtpu: 0.0.40
codegen_flags: <defaults>
</compile_context>

<pallas_src>
import jax
import jax.numpy as jnp
from jax.experimental import pallas as pl
from jax.experimental.pallas import tpu as pltpu

_LANE = 128
_MAX_TILE_T = 8192   # cap on the time tile (bounds trace size + VMEM; 2 MiB f32 @ tile_b=64)
_MAX_TILE_B = 64     # cap on the row tile (bounds vreg working set; still few grid steps)


def _round_up(v, m):
    return ((v + m - 1) // m) * m


def _make_kernel(tile_t):
    """Streaming shifted-moment kernel closed over the static tile width."""
    n_chunks = tile_t // _LANE

    def kernel(offx_ref, offy_ref, x_ref, y_ref, out_ref):
        t = pl.program_id(2)

        # The output block is the accumulator, resident across the "arbitrary" t axis.
        @pl.when(t == 0)
        def _init():
            out_ref[...] = jnp.zeros_like(out_ref)

        # Per-row offsets (first sample of each row), already lane-broadcast to 128.
        offx = offx_ref[...]
        offy = offy_ref[...]

        # Stream the tile in 128-lane chunks: pure VPU adds/muls, no masking, and no
        # cross-lane reductions in the hot loop (lane reduction is deferred to the
        # wrapper).  Chunking keeps the live vreg set small for any tile_t.
        for c in range(n_chunks):
            sl = slice(c * _LANE, (c + 1) * _LANE)
            xc = x_ref[:, sl].astype(jnp.float32) - offx
            yc = y_ref[:, sl].astype(jnp.float32) - offy
            out_ref[:, 0 * _LANE:1 * _LANE] += xc
            out_ref[:, 1 * _LANE:2 * _LANE] += yc
            out_ref[:, 2 * _LANE:3 * _LANE] += xc * yc
            out_ref[:, 3 * _LANE:4 * _LANE] += xc * xc
            out_ref[:, 4 * _LANE:5 * _LANE] += yc * yc

    return kernel


def short_np_loss(x, y):
    """Pallas equivalent of ShortNPLoss.forward(x, y)."""
    x = jnp.asarray(x)
    y = jnp.asarray(y)
    # Mirror the `if len(x.shape) == 1: unsqueeze(0)` branch.
    if x.ndim == 1:
        x = x[None, :]
        y = y[None, :]
    assert x.shape == y.shape and x.ndim == 2
    B, T = x.shape
    itemsize = jnp.dtype(x.dtype).itemsize

    # Per-row offsets (first sample): keep shifted moments well conditioned for
    # DC-heavy signals, and double as the pad value so padded columns contribute 0.
    offx_col = x[:, :1].astype(jnp.float32)   # (B, 1)
    offy_col = y[:, :1].astype(jnp.float32)

    # ---- row (batch) tiling: never pad rows when B <= _MAX_TILE_B ----
    if B <= _MAX_TILE_B:
        tile_b, b_pad = B, B
    else:
        b_pad = _round_up(B, 8)
        tile_b = 8
        for cand in range(_MAX_TILE_B, 8, -8):
            if b_pad % cand == 0:
                tile_b = cand
                break
    n_b = b_pad // tile_b

    # ---- column (time) tiling: minimize padding, cap tile at _MAX_TILE_T ----
    # v7x: when there is only one batch block, add a size-2 "parallel" split over the
    # T range so the second TensorCore gets work (no-op cost on v5e/v6e).
    n_split = 2 if (n_b == 1 and _round_up(T, _LANE) >= 1024) else 1
    n_total = n_split
    while _round_up(pl.cdiv(T, n_total), _LANE) > _MAX_TILE_T:
        n_total += n_split
    tile_t = _round_up(pl.cdiv(T, n_total), _LANE)
    n_t = n_total // n_split
    t_pad = tile_t * n_total

    # ---- padding ----
    # Pad T with the per-row offset value: (pad - off) == 0 exactly, so padded columns
    # add nothing to any moment (no in-kernel mask, no finalize correction).
    if t_pad != T:
        x = jnp.concatenate(
            [x, jnp.broadcast_to(offx_col.astype(x.dtype), (B, t_pad - T))], axis=1)
        y = jnp.concatenate(
            [y, jnp.broadcast_to(offy_col.astype(y.dtype), (B, t_pad - T))], axis=1)
    if b_pad != B:
        x = jnp.pad(x, ((0, b_pad - B), (0, 0)))
        y = jnp.pad(y, ((0, b_pad - B), (0, 0)))

    # Lane-broadcast offsets for the kernel (tiny, lane-dense input blocks).
    offx_in = jnp.broadcast_to(offx_col, (B, _LANE))
    offy_in = jnp.broadcast_to(offy_col, (B, _LANE))
    if b_pad != B:
        offx_in = jnp.pad(offx_in, ((0, b_pad - B), (0, 0)))
        offy_in = jnp.pad(offy_in, ((0, b_pad - B), (0, 0)))

    kernel = _make_kernel(tile_t)

    cost = pl.CostEstimate(
        flops=10 * b_pad * t_pad,
        transcendentals=0,
        bytes_accessed=(2 * b_pad * t_pad * itemsize
                        + b_pad * n_split * 5 * _LANE * 4
                        + 2 * b_pad * _LANE * 4),
    )

    out = pl.pallas_call(
        kernel,
        out_shape=jax.ShapeDtypeStruct((b_pad, n_split * 5 * _LANE), jnp.float32),
        grid=(n_split, n_b, n_t),
        in_specs=[
            pl.BlockSpec((tile_b, _LANE), lambda s, b, t: (b, 0)),
            pl.BlockSpec((tile_b, _LANE), lambda s, b, t: (b, 0)),
            pl.BlockSpec((tile_b, tile_t), lambda s, b, t: (b, s * n_t + t)),
            pl.BlockSpec((tile_b, tile_t), lambda s, b, t: (b, s * n_t + t)),
        ],
        out_specs=pl.BlockSpec((tile_b, 5 * _LANE), lambda s, b, t: (b, s)),
        compiler_params=pltpu.CompilerParams(
            dimension_semantics=("parallel", "parallel", "arbitrary"),
            vmem_limit_bytes=32 * 1024 * 1024,
        ),
        cost_estimate=cost,
    )(offx_in, offy_in, x, y)

    # ---- finalize in plain XLA (tiny): lane + split reduction, Pearson, batch mean ----
    parts = out.reshape(b_pad, n_split, 5, _LANE)
    m = jnp.sum(parts, axis=(1, 3))[:B]          # (B, 5): sx, sy, sxy, sxx, syy
    sx, sy, sxy, sxx, syy = (m[:, i] for i in range(5))

    n = jnp.float32(T)
    cov = sxy - sx * sy / n
    vx = sxx - sx * sx / n
    vy = syy - sy * sy / n
    # Constant rows give vx*vy == 0 -> NaN, matching torch.corrcoef behavior.
    corr = cov * jax.lax.rsqrt(vx * vy)
    return jnp.mean(1.0 - corr)


def _reference_np_loss(x, y):
    """Pure-JAX reference for sanity checking (two-pass, f32)."""
    x = jnp.asarray(x, jnp.float32)
    y = jnp.asarray(y, jnp.float32)
    if x.ndim == 1:
        x = x[None, :]
        y = y[None, :]
    xm = x - jnp.mean(x, axis=-1, keepdims=True)
    ym = y - jnp.mean(y, axis=-1, keepdims=True)
    cov = jnp.sum(xm * ym, axis=-1)
    corr = cov / jnp.sqrt(jnp.sum(xm * xm, axis=-1) * jnp.sum(ym * ym, axis=-1))
    return jnp.mean(1.0 - corr)


if __name__ == "__main__":
    key = jax.random.PRNGKey(0)

    def make_pair(k, shape, dc=0.0, dtype=jnp.float32):
        kx, ky = jax.random.split(k)
        base = jax.random.normal(kx, shape, dtype=jnp.float32)
        noise = jax.random.normal(ky, shape, dtype=jnp.float32)
        x = dc + base
        y = dc + 0.7 * base + 0.3 * noise
        return x.astype(dtype), y.astype(dtype)

    k1, k2, k3, k4, k5 = jax.random.split(key, 5)

    # 1) 1-D input (exercises the unsqueeze branch), short rPPG window.
    x1, y1 = make_pair(k1, (160,))
    out1 = jax.block_until_ready(short_np_loss(x1, y1))
    ref1 = _reference_np_loss(x1, y1)
    assert jnp.allclose(out1, ref1, rtol=1e-4, atol=1e-4), (out1, ref1)

    # 2) Small batch, typical short window.
    x2, y2 = make_pair(k2, (2, 160))
    out2 = jax.block_until_ready(short_np_loss(x2, y2))
    ref2 = _reference_np_loss(x2, y2)
    assert jnp.allclose(out2, ref2, rtol=1e-4, atol=1e-4), (out2, ref2)

    # 3) Single batch block, long T with DC offset (exercises the 2-way T split,
    #    minimal-pad tiling, and offset-valued padding).
    x3, y3 = make_pair(k3, (10, 3000), dc=100.0)
    out3 = jax.block_until_ready(short_np_loss(x3, y3))
    ref3 = _reference_np_loss(x3, y3)
    assert jnp.allclose(out3, ref3, rtol=2e-4, atol=5e-4), (out3, ref3)

    # 4) B > 64 (exercises multi-block batch tiling with row padding).
    x4, y4 = make_pair(k4, (80, 300))
    out4 = jax.block_until_ready(short_np_loss(x4, y4))
    ref4 = _reference_np_loss(x4, y4)
    assert jnp.allclose(out4, ref4, rtol=1e-4, atol=1e-4), (out4, ref4)

    # 5) bf16 inputs on the wire (no padding needed on this shape).
    x5, y5 = make_pair(k5, (4, 512), dtype=jnp.bfloat16)
    out5 = jax.block_until_ready(short_np_loss(x5, y5))
    ref5 = _reference_np_loss(x5, y5)
    assert jnp.allclose(out5, ref5, rtol=2e-3, atol=2e-3), (out5, ref5)

    print("KERNEL_OK")
</pallas_src>

<mosaic_0001>
module attributes {stable_mosaic.version = 11 : i64} {
  func.func @kernel(%arg0: i32, %arg1: i32, %arg2: i32, %arg3: memref<1x128xf32, #tpu.memory_space<vmem>>, %arg4: memref<1x128xf32, #tpu.memory_space<vmem>>, %arg5: memref<1x256xf32, #tpu.memory_space<vmem>>, %arg6: memref<1x256xf32, #tpu.memory_space<vmem>>, %arg7: memref<1x640xf32, #tpu.memory_space<vmem>>) attributes {dimension_semantics = [#tpu.dimension_semantics<parallel>, #tpu.dimension_semantics<parallel>, #tpu.dimension_semantics<arbitrary>], iteration_bounds = array<i64: 1, 1, 1>, scalar_prefetch = 0 : i64, scratch_operands = 0 : i64, tpu.core_type = #tpu.core_type<tc>, window_params = [{transform_indices = @transform_0, window_bounds = array<i64: 1, 128>}, {transform_indices = @transform_1, window_bounds = array<i64: 1, 128>}, {transform_indices = @transform_2, window_bounds = array<i64: 1, 256>}, {transform_indices = @transform_3, window_bounds = array<i64: 1, 256>}, {transform_indices = @transform_4, window_bounds = array<i64: 1, 640>}]} {
    %c0_i32 = arith.constant 0 : i32
    %0 = arith.cmpi eq, %arg2, %c0_i32 : i32
    %1 = arith.extui %0 : i1 to i32
    %c0_i32_0 = arith.constant 0 : i32
    %2 = arith.cmpi ne, %1, %c0_i32_0 : i32
    scf.if %2 {
      %cst = arith.constant 0.000000e+00 : f32
      %49 = vector.broadcast %cst : f32 to vector<1x640xf32>
      %c0_48 = arith.constant 0 : index
      %c0_49 = arith.constant 0 : index
      %50 = vector.load %arg7[%c0_48, %c0_49] : memref<1x640xf32, #tpu.memory_space<vmem>>, vector<1x640xf32>
      tpu.vector_store %arg7[%c0_48, %c0_49], %49 {strides = array<i32>} : memref<1x640xf32, #tpu.memory_space<vmem>>, vector<1x640xf32>,
    } else {
    }
    %c0 = arith.constant 0 : index
    %c0_1 = arith.constant 0 : index
    %3 = vector.load %arg3[%c0, %c0_1] : memref<1x128xf32, #tpu.memory_space<vmem>>, vector<1x128xf32>
    %c0_2 = arith.constant 0 : index
    %c0_3 = arith.constant 0 : index
    %4 = vector.load %arg4[%c0_2, %c0_3] : memref<1x128xf32, #tpu.memory_space<vmem>>, vector<1x128xf32>
    %c0_4 = arith.constant 0 : index
    %c0_5 = arith.constant 0 : index
    %5 = vector.load %arg5[%c0_4, %c0_5] : memref<1x256xf32, #tpu.memory_space<vmem>>, vector<1x128xf32>
    %6 = arith.subf %5, %3 : vector<1x128xf32>
    %c0_6 = arith.constant 0 : index
    %c0_7 = arith.constant 0 : index
    %7 = vector.load %arg6[%c0_6, %c0_7] : memref<1x256xf32, #tpu.memory_space<vmem>>, vector<1x128xf32>
    %8 = arith.subf %7, %4 : vector<1x128xf32>
    %c0_8 = arith.constant 0 : index
    %c0_9 = arith.constant 0 : index
    %9 = vector.load %arg7[%c0_8, %c0_9] : memref<1x640xf32, #tpu.memory_space<vmem>>, vector<1x128xf32>
    %10 = arith.addf %9, %6 : vector<1x128xf32>
    %c0_10 = arith.constant 0 : index
    %c0_11 = arith.constant 0 : index
    %11 = vector.load %arg7[%c0_10, %c0_11] : memref<1x640xf32, #tpu.memory_space<vmem>>, vector<1x128xf32>
    tpu.vector_store %arg7[%c0_10, %c0_11], %10 {strides = array<i32>} : memref<1x640xf32, #tpu.memory_space<vmem>>, vector<1x128xf32>,
    %c0_12 = arith.constant 0 : index
    %c128 = arith.constant 128 : index
    %12 = vector.load %arg7[%c0_12, %c128] : memref<1x640xf32, #tpu.memory_space<vmem>>, vector<1x128xf32>
    %13 = arith.addf %12, %8 : vector<1x128xf32>
    %c0_13 = arith.constant 0 : index
    %c128_14 = arith.constant 128 : index
    %14 = vector.load %arg7[%c0_13, %c128_14] : memref<1x640xf32, #tpu.memory_space<vmem>>, vector<1x128xf32>
    tpu.vector_store %arg7[%c0_13, %c128_14], %13 {strides = array<i32>} : memref<1x640xf32, #tpu.memory_space<vmem>>, vector<1x128xf32>,
    %c0_15 = arith.constant 0 : index
    %c256 = arith.constant 256 : index
    %15 = vector.load %arg7[%c0_15, %c256] : memref<1x640xf32, #tpu.memory_space<vmem>>, vector<1x128xf32>
    %16 = arith.mulf %6, %8 : vector<1x128xf32>
    %17 = arith.addf %15, %16 : vector<1x128xf32>
    %c0_16 = arith.constant 0 : index
    %c256_17 = arith.constant 256 : index
    %18 = vector.load %arg7[%c0_16, %c256_17] : memref<1x640xf32, #tpu.memory_space<vmem>>, vector<1x128xf32>
    tpu.vector_store %arg7[%c0_16, %c256_17], %17 {strides = array<i32>} : memref<1x640xf32, #tpu.memory_space<vmem>>, vector<1x128xf32>,
    %c0_18 = arith.constant 0 : index
    %c384 = arith.constant 384 : index
    %19 = vector.load %arg7[%c0_18, %c384] : memref<1x640xf32, #tpu.memory_space<vmem>>, vector<1x128xf32>
    %20 = arith.mulf %6, %6 : vector<1x128xf32>
    %21 = arith.addf %19, %20 : vector<1x128xf32>
    %c0_19 = arith.constant 0 : index
    %c384_20 = arith.constant 384 : index
    %22 = vector.load %arg7[%c0_19, %c384_20] : memref<1x640xf32, #tpu.memory_space<vmem>>, vector<1x128xf32>
    tpu.vector_store %arg7[%c0_19, %c384_20], %21 {strides = array<i32>} : memref<1x640xf32, #tpu.memory_space<vmem>>, vector<1x128xf32>,
    %c0_21 = arith.constant 0 : index
    %c512 = arith.constant 512 : index
    %23 = vector.load %arg7[%c0_21, %c512] : memref<1x640xf32, #tpu.memory_space<vmem>>, vector<1x128xf32>
    %24 = arith.mulf %8, %8 : vector<1x128xf32>
    %25 = arith.addf %23, %24 : vector<1x128xf32>
    %c0_22 = arith.constant 0 : index
    %c512_23 = arith.constant 512 : index
    %26 = vector.load %arg7[%c0_22, %c512_23] : memref<1x640xf32, #tpu.memory_space<vmem>>, vector<1x128xf32>
    tpu.vector_store %arg7[%c0_22, %c512_23], %25 {strides = array<i32>} : memref<1x640xf32, #tpu.memory_space<vmem>>, vector<1x128xf32>,
    %c0_24 = arith.constant 0 : index
    %c128_25 = arith.constant 128 : index
    %27 = vector.load %arg5[%c0_24, %c128_25] : memref<1x256xf32, #tpu.memory_space<vmem>>, vector<1x128xf32>
    %28 = arith.subf %27, %3 : vector<1x128xf32>
    %c0_26 = arith.constant 0 : index
    %c128_27 = arith.constant 128 : index
    %29 = vector.load %arg6[%c0_26, %c128_27] : memref<1x256xf32, #tpu.memory_space<vmem>>, vector<1x128xf32>
    %30 = arith.subf %29, %4 : vector<1x128xf32>
    %c0_28 = arith.constant 0 : index
    %c0_29 = arith.constant 0 : index
    %31 = vector.load %arg7[%c0_28, %c0_29] : memref<1x640xf32, #tpu.memory_space<vmem>>, vector<1x128xf32>
    %32 = arith.addf %31, %28 : vector<1x128xf32>
    %c0_30 = arith.constant 0 : index
    %c0_31 = arith.constant 0 : index
    %33 = vector.load %arg7[%c0_30, %c0_31] : memref<1x640xf32, #tpu.memory_space<vmem>>, vector<1x128xf32>
    tpu.vector_store %arg7[%c0_30, %c0_31], %32 {strides = array<i32>} : memref<1x640xf32, #tpu.memory_space<vmem>>, vector<1x128xf32>,
    %c0_32 = arith.constant 0 : index
    %c128_33 = arith.constant 128 : index
    %34 = vector.load %arg7[%c0_32, %c128_33] : memref<1x640xf32, #tpu.memory_space<vmem>>, vector<1x128xf32>
    %35 = arith.addf %34, %30 : vector<1x128xf32>
    %c0_34 = arith.constant 0 : index
    %c128_35 = arith.constant 128 : index
    %36 = vector.load %arg7[%c0_34, %c128_35] : memref<1x640xf32, #tpu.memory_space<vmem>>, vector<1x128xf32>
    tpu.vector_store %arg7[%c0_34, %c128_35], %35 {strides = array<i32>} : memref<1x640xf32, #tpu.memory_space<vmem>>, vector<1x128xf32>,
    %c0_36 = arith.constant 0 : index
    %c256_37 = arith.constant 256 : index
    %37 = vector.load %arg7[%c0_36, %c256_37] : memref<1x640xf32, #tpu.memory_space<vmem>>, vector<1x128xf32>
    %38 = arith.mulf %28, %30 : vector<1x128xf32>
    %39 = arith.addf %37, %38 : vector<1x128xf32>
    %c0_38 = arith.constant 0 : index
    %c256_39 = arith.constant 256 : index
    %40 = vector.load %arg7[%c0_38, %c256_39] : memref<1x640xf32, #tpu.memory_space<vmem>>, vector<1x128xf32>
    tpu.vector_store %arg7[%c0_38, %c256_39], %39 {strides = array<i32>} : memref<1x640xf32, #tpu.memory_space<vmem>>, vector<1x128xf32>,
    %c0_40 = arith.constant 0 : index
    %c384_41 = arith.constant 384 : index
    %41 = vector.load %arg7[%c0_40, %c384_41] : memref<1x640xf32, #tpu.memory_space<vmem>>, vector<1x128xf32>
    %42 = arith.mulf %28, %28 : vector<1x128xf32>
    %43 = arith.addf %41, %42 : vector<1x128xf32>
    %c0_42 = arith.constant 0 : index
    %c384_43 = arith.constant 384 : index
    %44 = vector.load %arg7[%c0_42, %c384_43] : memref<1x640xf32, #tpu.memory_space<vmem>>, vector<1x128xf32>
    tpu.vector_store %arg7[%c0_42, %c384_43], %43 {strides = array<i32>} : memref<1x640xf32, #tpu.memory_space<vmem>>, vector<1x128xf32>,
    %c0_44 = arith.constant 0 : index
    %c512_45 = arith.constant 512 : index
    %45 = vector.load %arg7[%c0_44, %c512_45] : memref<1x640xf32, #tpu.memory_space<vmem>>, vector<1x128xf32>
    %46 = arith.mulf %30, %30 : vector<1x128xf32>
    %47 = arith.addf %45, %46 : vector<1x128xf32>
    %c0_46 = arith.constant 0 : index
    %c512_47 = arith.constant 512 : index
    %48 = vector.load %arg7[%c0_46, %c512_47] : memref<1x640xf32, #tpu.memory_space<vmem>>, vector<1x128xf32>
    tpu.vector_store %arg7[%c0_46, %c512_47], %47 {strides = array<i32>} : memref<1x640xf32, #tpu.memory_space<vmem>>, vector<1x128xf32>,
    return
  }
  func.func @transform_0(%arg0: i32, %arg1: i32, %arg2: i32) -> (i32, i32) {
    %c0_i32 = arith.constant 0 : i32
    %c0_i32_0 = arith.constant 0 : i32
    return %arg1, %c0_i32 : i32, i32
  }
  func.func @transform_1(%arg0: i32, %arg1: i32, %arg2: i32) -> (i32, i32) {
    %c0_i32 = arith.constant 0 : i32
    %c0_i32_0 = arith.constant 0 : i32
    return %arg1, %c0_i32 : i32, i32
  }
  func.func @transform_2(%arg0: i32, %arg1: i32, %arg2: i32) -> (i32, i32) {
    %c1_i32 = arith.constant 1 : i32
    %0 = arith.muli %arg0, %c1_i32 : i32
    %1 = arith.addi %0, %arg2 : i32
    %c0_i32 = arith.constant 0 : i32
    return %arg1, %1 : i32, i32
  }
  func.func @transform_3(%arg0: i32, %arg1: i32, %arg2: i32) -> (i32, i32) {
    %c1_i32 = arith.constant 1 : i32
    %0 = arith.muli %arg0, %c1_i32 : i32
    %1 = arith.addi %0, %arg2 : i32
    %c0_i32 = arith.constant 0 : i32
    return %arg1, %1 : i32, i32
  }
  func.func @transform_4(%arg0: i32, %arg1: i32, %arg2: i32) -> (i32, i32) {
    %c0_i32 = arith.constant 0 : i32
    return %arg1, %arg0 : i32, i32
  }
}

</mosaic_0001>

<llo_original>
// kernel: tpu_custom_call.1
$region0: #{tpu_custom_call.1}
  #allocation0 [shape = 'u32[]', space=smem, size = 0x4, offset = 0x4, fixed_abs, tag = 'smem constant byte address 0x4 - core index']
  #allocation1 [shape = 'u32[144,128]{1,0:T(1,128)}', space=vmem, size = 0x12000, scoped, tag = 'internal scratch']
  %s0 = inlined_call_operand.hbm [shape: f32[1,128], index: 0, kind: input, shape index: {}]
  %s1 = inlined_call_operand.vmem [shape: f32[1,128], index: 1, kind: input, shape index: {}]
  %s2 = inlined_call_operand.vmem [shape: f32[1,256], index: 2, kind: input, shape index: {}]
  %s3 = inlined_call_operand.vmem [shape: f32[1,256], index: 3, kind: input, shape index: {}]
  %s4 = inlined_call_operand.hbm [shape: f32[1,640], index: 4, kind: output, shape index: {}]
  %s5 = sld [smem:[#allocation0]]
  $region34: #{tpu_custom_call.1} parent=0
    _
  %s7 = ssub.s32 1, %s5
  %s8 = scalar_select 0, %s7, %s5
  $region1: #{tpu_custom_call.1} parent=0
    #allocation2 [shape = 'u8[512]{0}', space=vmem, size = 0x400, scoped, tag = 'input window, operand 0, single buffered']
    #allocation3 [shape = 's32[1]{0}', space=sflag, size = 0x4, scoped, tag = 'scoped memory for tpu_custom_call.1']
    #allocation4 [shape = 's32[1]{0}', space=sflag, size = 0x4, scoped, tag = 'scoped memory for tpu_custom_call.1']
    #allocation5 [shape = 'u8[2560]{0}', space=vmem, size = 0xc00, scoped, tag = 'output window, operand 0, single buffered']
    %9 = vsyncpa [#allocation3], 0
    %10 = vsyncpa [#allocation4], 0
    // Predicated region
    $region2: #{tpu_custom_call.1} parent=1 // pred_check
      _
    $region3: #{tpu_custom_call.1} parent=1 // pred_check_branch
      %12 = sbr.rel (0) target = $region5
    $region4: #{tpu_custom_call.1} parent=1 // pred_region
      %s14 = ssub.s32 16, 16
      %15 = vsyncadd [#allocation3], %s14
      %s17 = sshll.u32 [#allocation2], 4
      %s18 = int_to_ptr.vmem [resolvable:$true] %s17
      %20 = dma.hbm_to_vmem [thread:$0]  %s0, 16, %s18, [#allocation3]
    $region5: #{tpu_custom_call.1} parent=1 // pred_fallthru
      _
    // Predicated region
    $region6: #{tpu_custom_call.1} parent=1 // pred_check
      _
    $region7: #{tpu_custom_call.1} parent=1 // pred_check_branch
      %22 = sbr.rel (0) target = $region9
    $region8: #{tpu_custom_call.1} parent=1 // pred_region
      _
    $region9: #{tpu_custom_call.1} parent=1 // pred_fallthru
      _
    // Predicated region
    $region10: #{tpu_custom_call.1} parent=1 // pred_check
      _
    $region11: #{tpu_custom_call.1} parent=1 // pred_check_branch
      %24 = sbr.rel (0) target = $region13
    $region12: #{tpu_custom_call.1} parent=1 // pred_region
      %s25 = sadd.s32 0, 0
      %s26 = smul.u32 2, %s25
      %p27 = scmp.lt.s32.totalorder %s26, 1
      %s28 = scalar_select %p27, %s26, 1
      %s29 = scalar_lea.vmem %s2, %s28
      %s30 = sadd.s32 0, 0
      %s31 = smul.u32 2, %s30
    $region13: #{tpu_custom_call.1} parent=1 // pred_fallthru
      _
    // Predicated region
    $region14: #{tpu_custom_call.1} parent=1 // pred_check
      _
    $region15: #{tpu_custom_call.1} parent=1 // pred_check_branch
      %33 = sbr.rel (0) target = $region17
    $region16: #{tpu_custom_call.1} parent=1 // pred_region
      %s34 = sadd.s32 0, 0
      %s35 = smul.u32 2, %s34
      %p36 = scmp.lt.s32.totalorder %s35, 1
      %s37 = scalar_select %p36, %s35, 1
      %s38 = scalar_lea.vmem %s3, %s37
      %s39 = sadd.s32 0, 0
      %s40 = smul.u32 2, %s39
    $region17: #{tpu_custom_call.1} parent=1 // pred_fallthru
      _
    // Predicated region
    $region18: #{tpu_custom_call.1} parent=1 // pred_check
      _
    $region19: #{tpu_custom_call.1} parent=1 // pred_check_branch
      %42 = sbr.rel (0) target = $region21
    $region20: #{tpu_custom_call.1} parent=1 // pred_region
      %43 = dma.done [#allocation3], 16
    $region21: #{tpu_custom_call.1} parent=1 // pred_fallthru
      _
    %s44 = sadd.s32 0, 0
    %s45 = smul.u32 2, %s44
    %p46 = scmp.lt.s32.totalorder %s45, 1
    %s47 = scalar_select %p46, %s45, 1
    %s48 = scalar_lea.vmem %s2, %s47
    %s49 = sadd.s32 0, 0
    %s50 = smul.u32 2, %s49
    %p51 = scmp.lt.s32.totalorder %s50, 1
    %s52 = scalar_select %p51, %s50, 1
    %s53 = scalar_lea.vmem %s3, %s52
    %s54 = sadd.s32 0, 0
    %s55 = smul.u32 2, %s54
    %p56 = scmp.lt.s32.totalorder %s55, 1
    %s57 = scalar_select %p56, %s55, 1
    %s58 = scalar_lea.vmem %s2, %s57
    %s59 = sadd.s32 0, 0
    %s60 = smul.u32 2, %s59
    %s61 = sadd.s32 0, 0
    %s62 = smul.u32 2, %s61
    %p63 = scmp.lt.s32.totalorder %s62, 1
    %s64 = scalar_select %p63, %s62, 1
    %s65 = scalar_lea.vmem %s3, %s64
    %s66 = sadd.s32 0, 0
    %s67 = smul.u32 2, %s66
    %p68 = scmp.eq.s32.totalorder 0, 0
    // Predicated region
    $region22: #{tpu_custom_call.1} parent=1 // pred_check
      %p69 = pneg %p68
    $region23: #{tpu_custom_call.1} parent=1 // pred_check_branch
      %71 = sbr.rel (%p69) target = $region25
    $region24: #{tpu_custom_call.1} parent=1 // pred_region
      %v72 = vlaneseq
      %vm73 = vcmp.ge.s32.totalorder %v72, 0
      %vm74 = vcmp.lt.s32.totalorder %v72, 640
      %vm75 = vmand %vm73, %vm74
      %76 = vst.msk [vmem:[#allocation5] sm:$0x1f] %vm75, 0.0
    $region25: #{tpu_custom_call.1} parent=1 // pred_fallthru
      _
    %v77 = vld [vmem:[#allocation2] sm:$0x1]
    %v78 = vld [vmem:[%s1] sm:$0x1]
    %v79 = vld [vmem:[%s58] sm:$0x1]
    %v80 = vsub.f32 %v79, %v77
    %v81 = vld [vmem:[%s65] sm:$0x1]
    %v82 = vsub.f32 %v81, %v78
    %v83 = vld [vmem:[#allocation5] sm:$0x1]
    %v84 = vadd.f32 %v83, %v80
    %v85 = vlaneseq
    %vm86 = vcmp.ge.s32.totalorder %v85, 0
    %vm87 = vcmp.lt.s32.totalorder %v85, 128
    %vm88 = vmand %vm86, %vm87
    %89 = vst.msk [vmem:[#allocation5] sm:$0x1] %vm88, %v84
    %v90 = vld [vmem:[#allocation5 + $0x1] sm:$0x1]
    %v91 = vadd.f32 %v90, %v82
    %92 = vst.msk [vmem:[#allocation5 + $0x1] sm:$0x1] %vm88, %v91
    %v93 = vld [vmem:[#allocation5 + $0x2] sm:$0x1]
    %v94 = vmul.f32 %v80, %v82
    %v95 = vadd.f32 %v93, %v94
    %96 = vst.msk [vmem:[#allocation5 + $0x2] sm:$0x1] %vm88, %v95
    %v97 = vld [vmem:[#allocation5 + $0x3] sm:$0x1]
    %v98 = vmul.f32 %v80, %v80
    %v99 = vadd.f32 %v97, %v98
    %100 = vst.msk [vmem:[#allocation5 + $0x3] sm:$0x1] %vm88, %v99
    %v101 = vld [vmem:[#allocation5 + $0x4] sm:$0x1]
    %v102 = vmul.f32 %v82, %v82
    %v103 = vadd.f32 %v101, %v102
    %104 = vst.msk [vmem:[#allocation5 + $0x4] sm:$0x1] %vm88, %v103
    %v105 = vld [vmem:[%s58 + $0x1] sm:$0x1]
    %v106 = vsub.f32 %v105, %v77
    %v107 = vld [vmem:[%s65 + $0x1] sm:$0x1]
    %v108 = vsub.f32 %v107, %v78
    %v109 = vld [vmem:[#allocation5] sm:$0x1]
    %v110 = vadd.f32 %v109, %v106
    %111 = vst.msk [vmem:[#allocation5] sm:$0x1] %vm88, %v110
    %v112 = vld [vmem:[#allocation5 + $0x1] sm:$0x1]
    %v113 = vadd.f32 %v112, %v108
    %114 = vst.msk [vmem:[#allocation5 + $0x1] sm:$0x1] %vm88, %v113
    %v115 = vld [vmem:[#allocation5 + $0x2] sm:$0x1]
    %v116 = vmul.f32 %v106, %v108
    %v117 = vadd.f32 %v115, %v116
    %118 = vst.msk [vmem:[#allocation5 + $0x2] sm:$0x1] %vm88, %v117
    %v119 = vld [vmem:[#allocation5 + $0x3] sm:$0x1]
    %v120 = vmul.f32 %v106, %v106
    %v121 = vadd.f32 %v119, %v120
    %122 = vst.msk [vmem:[#allocation5 + $0x3] sm:$0x1] %vm88, %v121
    %v123 = vld [vmem:[#allocation5 + $0x4] sm:$0x1]
    %v124 = vmul.f32 %v108, %v108
    %v125 = vadd.f32 %v123, %v124
    %126 = vst.msk [vmem:[#allocation5 + $0x4] sm:$0x1] %vm88, %v125
    // Predicated region
    $region26: #{tpu_custom_call.1} parent=1 // pred_check
      _
    $region27: #{tpu_custom_call.1} parent=1 // pred_check_branch
      %128 = sbr.rel (0) target = $region29
    $region28: #{tpu_custom_call.1} parent=1 // pred_region
      %s130 = ssub.s32 80, 80
      %131 = vsyncadd [#allocation4], %s130
      %s133 = sshll.u32 [#allocation5], 4
      %s134 = int_to_ptr.vmem [resolvable:$true] %s133
      %136 = dma.vmem_to_hbm [thread:$0]  %s134, 80, %s4, [#allocation4]
    $region29: #{tpu_custom_call.1} parent=1 // pred_fallthru
      _
    // Predicated region
    $region30: #{tpu_custom_call.1} parent=1 // pred_check
      _
    $region31: #{tpu_custom_call.1} parent=1 // pred_check_branch
      %138 = sbr.rel (0) target = $region33
    $region32: #{tpu_custom_call.1} parent=1 // pred_region
      %139 = dma.done [#allocation4], 80
    $region33: #{tpu_custom_call.1} parent=1 // pred_fallthru
      _
    %140 = vsyncpa [#allocation3], 1
    %141 = vsyncpa [#allocation4], 1

</llo_original>
